<compile_context>
chip_gen: v5e
topology: v5e:2x2
jax: 0.10.0
libtpu: 0.0.40
codegen_flags: <defaults>
</compile_context>

<pallas_src>
import functools

import jax
import jax.numpy as jnp
from jax.experimental import pallas as pl
from jax.experimental.pallas import tpu as pltpu


def _round_up(x, m):
    return (x + m - 1) // m * m


def _divisor_block(dim_p, target, align=128):
    """Largest multiple of `align` that is <= target and divides dim_p
    (dim_p itself is assumed to be a multiple of `align`)."""
    if dim_p <= target:
        return dim_p
    b = (target // align) * align
    while dim_p % b:
        b -= align
    return b


# ---------------------------------------------------------------------------
# Fused whole-MLP kernel: all layer weights resident in VMEM, one pallas_call.
# ---------------------------------------------------------------------------
def _fused_mlp_kernel(*refs, n_layers):
    x_ref, o_ref = refs[0], refs[-1]
    h = x_ref[...]                                        # bf16 (bm, K0p)
    for l in range(n_layers):                             # static unroll
        w_ref = refs[1 + 2 * l]
        b_ref = refs[2 + 2 * l]
        acc = jnp.dot(h, w_ref[...], preferred_element_type=jnp.float32)
        acc = acc + b_ref[...]                            # (bm,Np) + (1,Np)
        if l < n_layers - 1:                              # hidden: fused ReLU,
            h = jnp.maximum(acc, 0.0).astype(jnp.bfloat16)  # bf16 hand-off
        else:                                             # final: no activation
            o_ref[...] = acc.astype(o_ref.dtype)


def _fused_mlp(x2d, prepared, *, block_m):
    M, K0 = x2d.shape
    n_layers = len(prepared)
    K0p = prepared[0][0].shape[0]
    NLp = prepared[-1][0].shape[1]

    bm = min(block_m, _round_up(M, 16))     # 16-row bf16-packed M tile
    Mp = _round_up(M, bm)
    xp = jnp.pad(x2d, ((0, Mp - M), (0, K0p - K0))).astype(jnp.bfloat16)

    in_specs = [pl.BlockSpec((bm, K0p), lambda i: (i, 0))]
    args = [xp]
    for (wp, bp) in prepared:
        Kp, Np = wp.shape
        # Constant block index across the M grid -> weights are DMA'd once and
        # stay resident in VMEM for all M tiles.
        in_specs.append(pl.BlockSpec((Kp, Np), lambda i: (0, 0)))
        in_specs.append(pl.BlockSpec((1, Np), lambda i: (0, 0)))
        args += [wp, bp]

    return pl.pallas_call(
        functools.partial(_fused_mlp_kernel, n_layers=n_layers),
        out_shape=jax.ShapeDtypeStruct((Mp, NLp), jnp.float32),
        grid_spec=pltpu.PrefetchScalarGridSpec(
            num_scalar_prefetch=0,
            grid=(Mp // bm,),
            in_specs=in_specs,
            out_specs=pl.BlockSpec((bm, NLp), lambda i: (i, 0)),
        ),
        compiler_params=pltpu.CompilerParams(
            dimension_semantics=("parallel",),
            vmem_limit_bytes=32 << 20),
    )(*args)


_FUSED_VMEM_BUDGET = 20 * 1024 * 1024   # conservative vs. 32 MiB scoped VMEM


def _fused_vmem_bytes(prepared, bm):
    """Rough VMEM footprint of the fused kernel (double-buffered operands)."""
    total = 0
    for (w, b) in prepared:
        total += 2 * (w.size * w.dtype.itemsize + b.size * b.dtype.itemsize)
    k0p = prepared[0][0].shape[0]
    nlp = prepared[-1][0].shape[1]
    nmax = max(w.shape[1] for (w, _) in prepared)
    total += 2 * bm * k0p * 2          # x tile (bf16), double buffered
    total += 2 * bm * nlp * 4          # out tile (f32), double buffered
    total += 2 * bm * nmax * 4         # in-kernel activations / accumulators
    return total


# ---------------------------------------------------------------------------
# Fallback: tiled per-layer linear kernel (weights too large for VMEM).
# ---------------------------------------------------------------------------
def _linear_kernel(x_ref, w_ref, b_ref, o_ref, acc_ref, *, do_relu):
    k = pl.program_id(2)

    @pl.when(k == 0)
    def _():
        acc_ref[...] = jnp.zeros_like(acc_ref)

    acc_ref[...] += jnp.dot(x_ref[...], w_ref[...],
                            preferred_element_type=jnp.float32)

    @pl.when(k == pl.num_programs(2) - 1)
    def _():
        y = acc_ref[...] + b_ref[...]          # (bm,bn) + (1,bn) broadcast
        if do_relu:                            # static flag, fused epilogue
            y = jnp.maximum(y, 0.0)
        o_ref[...] = y.astype(o_ref.dtype)


def _linear_tiled(xp, wp, bp, *, relu, out_dtype,
                  block_m=512, block_n=512, block_k=1024):
    """xp: (Mp, Kp) bf16 padded (Mp % block_m == 0); wp: (Kp, Np) bf16;
    bp: (1, Np) f32.  Returns padded (Mp, Np) array of out_dtype."""
    Mp, Kp = xp.shape
    _, Np = wp.shape
    bm = min(block_m, Mp)
    bn = _divisor_block(Np, block_n)
    bk = _divisor_block(Kp, block_k)
    grid = (Mp // bm, Np // bn, Kp // bk)
    return pl.pallas_call(
        functools.partial(_linear_kernel, do_relu=relu),
        out_shape=jax.ShapeDtypeStruct((Mp, Np), out_dtype),
        grid_spec=pltpu.PrefetchScalarGridSpec(
            num_scalar_prefetch=0,
            grid=grid,
            in_specs=[
                pl.BlockSpec((bm, bk), lambda i, j, k: (i, k)),
                # Deeper buffering on the weight stream: at small bm the per-K
                # compute is tiny, so keep the weight DMA engine saturated.
                pl.BlockSpec((bk, bn), lambda i, j, k: (k, j),
                             pipeline_mode=pl.Buffered(3)),
                pl.BlockSpec((1, bn), lambda i, j, k: (0, j)),
            ],
            out_specs=pl.BlockSpec((bm, bn), lambda i, j, k: (i, j)),
            scratch_shapes=[pltpu.VMEM((bm, bn), jnp.float32)],
        ),
        compiler_params=pltpu.CompilerParams(
            dimension_semantics=("parallel", "parallel", "arbitrary"),
            vmem_limit_bytes=48 << 20),
    )(xp, wp, bp)


def _layered_mlp(x2d, prepared, *, block_m=512):
    M, K0 = x2d.shape
    bm = min(block_m, _round_up(M, 16))
    Mp = _round_up(M, bm)
    K0p = prepared[0][0].shape[0]
    h = jnp.pad(x2d, ((0, Mp - M), (0, K0p - K0))).astype(jnp.bfloat16)
    n_layers = len(prepared)
    for l, (wp, bp) in enumerate(prepared):
        last = (l == n_layers - 1)
        # bf16 hidden hand-off between layers; f32 only for the final layer.
        h = _linear_tiled(h, wp, bp, relu=not last,
                          out_dtype=jnp.float32 if last else jnp.bfloat16,
                          block_m=bm)
    return h


# ---------------------------------------------------------------------------
# Parameters (PyTorch nn.Linear-style init) and forward pass.
# ---------------------------------------------------------------------------
def init_mlp_params(key, input_dim, output_dim, dim, n_blk):
    """U(-1/sqrt(fan_in), 1/sqrt(fan_in)) init, mirroring
    MLP(input_dim, output_dim, dim, n_blk, norm='none', activ='relu')."""
    dims = [input_dim] + [dim] * max(n_blk - 1, 1) + [output_dim]
    params = []
    for din, dout in zip(dims[:-1], dims[1:]):
        key, kw, kb = jax.random.split(key, 3)
        bound = 1.0 / (din ** 0.5)
        w = jax.random.uniform(kw, (din, dout), jnp.float32, -bound, bound)
        b = jax.random.uniform(kb, (dout,), jnp.float32, -bound, bound)
        params.append((w, b))
    return tuple(params)


def prepare_mlp_params(params):
    """One-time prepass: pad weights/biases to 128-lane-aligned shapes and
    cast weights to bf16.  Done once, NOT inside every forward call."""
    prepared = []
    for (w, b) in params:
        K, N = w.shape
        Kp, Np = _round_up(K, 128), _round_up(N, 128)
        wp = jnp.pad(w, ((0, Kp - K), (0, Np - N))).astype(jnp.bfloat16)
        bp = jnp.pad(b, ((0, Np - N),)).astype(jnp.float32).reshape(1, Np)
        prepared.append((wp, bp))
    return tuple(prepared)


def mlp_forward(x, prepared, *, output_dim, block_m=256):
    """Mirror of MLP.forward: x.view(B, -1) -> hidden ReLU blocks -> final
    Linear (no activation).  `prepared` comes from prepare_mlp_params()."""
    B = x.shape[0]
    h2d = x.reshape(B, -1).astype(jnp.float32)
    bm = min(block_m, _round_up(B, 16))
    if _fused_vmem_bytes(prepared, bm) <= _FUSED_VMEM_BUDGET:
        out_p = _fused_mlp(h2d, prepared, block_m=bm)       # single kernel
    else:
        out_p = _layered_mlp(h2d, prepared, block_m=512)    # tiled fallback
    # Single tiny slice of the final padded output (hidden activations never
    # round-trip through HBM or get re-sliced).
    return out_p[:B, :output_dim]
    # TODO(synk): norm='bn'/'in'/'ln'/'sn' branches and lrelu/prelu/selu/tanh
    # activations of LinearBlock are not used by the default MLP config and
    # are not implemented here (SpectralNorm's power iteration is a host-side
    # parameter update, not a forward-pass kernel).


if __name__ == "__main__":
    key = jax.random.PRNGKey(0)
    k_param, k_x = jax.random.split(key)

    # Small, MLP-consistent shapes: style-code-like input (B, C, 1, 1).
    INPUT_DIM, OUTPUT_DIM, DIM, N_BLK = 8, 64, 256, 3
    params = init_mlp_params(k_param, INPUT_DIM, OUTPUT_DIM, DIM, N_BLK)
    prepared = prepare_mlp_params(params)        # one-time pad + bf16 cast

    x = jax.random.normal(k_x, (2, INPUT_DIM, 1, 1), jnp.float32)

    fwd = jax.jit(functools.partial(mlp_forward, output_dim=OUTPUT_DIM))
    out = jax.block_until_ready(fwd(x, prepared))

    assert out.shape == (2, OUTPUT_DIM), out.shape
    assert bool(jnp.all(jnp.isfinite(out)))

    # Validate against a pure-JAX f32 reference (bf16 MXU rounding tolerance).
    h = x.reshape(2, -1)
    for (w, b) in params[:-1]:
        h = jnp.maximum(h @ w + b, 0.0)
    ref = h @ params[-1][0] + params[-1][1]
    assert bool(jnp.allclose(out, ref, atol=2e-2, rtol=2e-2)), \
        float(jnp.max(jnp.abs(out - ref)))

    print("KERNEL_OK")
</pallas_src>

<mosaic_0001>
module attributes {stable_mosaic.version = 11 : i64} {
  func.func @_fused_mlp_kernel(%arg0: i32, %arg1: memref<16x128xbf16, #tpu.memory_space<vmem>>, %arg2: memref<128x256xbf16, #tpu.memory_space<vmem>>, %arg3: memref<1x256xf32, #tpu.memory_space<vmem>>, %arg4: memref<256x256xbf16, #tpu.memory_space<vmem>>, %arg5: memref<1x256xf32, #tpu.memory_space<vmem>>, %arg6: memref<256x128xbf16, #tpu.memory_space<vmem>>, %arg7: memref<1x128xf32, #tpu.memory_space<vmem>>, %arg8: memref<16x128xf32, #tpu.memory_space<vmem>>) attributes {dimension_semantics = [#tpu.dimension_semantics<parallel>], iteration_bounds = array<i64: 1>, scalar_prefetch = 0 : i64, scratch_operands = 0 : i64, tpu.core_type = #tpu.core_type<tc>, window_params = [{transform_indices = @transform_0, window_bounds = array<i64: 16, 128>}, {pipeline_mode = #tpu.pipeline_mode<synchronous>, transform_indices = @transform_1, window_bounds = array<i64: 128, 256>}, {pipeline_mode = #tpu.pipeline_mode<synchronous>, transform_indices = @transform_2, window_bounds = array<i64: 1, 256>}, {pipeline_mode = #tpu.pipeline_mode<synchronous>, transform_indices = @transform_3, window_bounds = array<i64: 256, 256>}, {pipeline_mode = #tpu.pipeline_mode<synchronous>, transform_indices = @transform_4, window_bounds = array<i64: 1, 256>}, {pipeline_mode = #tpu.pipeline_mode<synchronous>, transform_indices = @transform_5, window_bounds = array<i64: 256, 128>}, {pipeline_mode = #tpu.pipeline_mode<synchronous>, transform_indices = @transform_6, window_bounds = array<i64: 1, 128>}, {transform_indices = @transform_7, window_bounds = array<i64: 16, 128>}]} {
    %c0 = arith.constant 0 : index
    %c0_0 = arith.constant 0 : index
    %0 = vector.load %arg1[%c0, %c0_0] : memref<16x128xbf16, #tpu.memory_space<vmem>>, vector<16x128xbf16>
    %c0_1 = arith.constant 0 : index
    %c0_2 = arith.constant 0 : index
    %1 = vector.load %arg2[%c0_1, %c0_2] : memref<128x256xbf16, #tpu.memory_space<vmem>>, vector<128x256xbf16>
    %cst = arith.constant dense<0.000000e+00> : vector<16x256xf32>
    %2 = tpu.matmul %0, %1, %cst {dimension_numbers = #tpu.dot_dimension_numbers<[1], [0], [0], [1], [0, 0, 1, 1], [], []>} : vector<16x128xbf16>, vector<128x256xbf16>, vector<16x256xf32> -> vector<16x256xf32>
    %c0_3 = arith.constant 0 : index
    %c0_4 = arith.constant 0 : index
    %3 = vector.load %arg3[%c0_3, %c0_4] : memref<1x256xf32, #tpu.memory_space<vmem>>, vector<1x256xf32>
    %4 = vector.broadcast %3 : vector<1x256xf32> to vector<16x256xf32>
    %5 = arith.addf %2, %4 : vector<16x256xf32>
    %cst_5 = arith.constant 0.000000e+00 : f32
    %6 = vector.broadcast %cst_5 : f32 to vector<16x256xf32>
    %7 = arith.maximumf %5, %6 : vector<16x256xf32>
    %8 = arith.truncf %7 : vector<16x256xf32> to vector<16x256xbf16>
    %c0_6 = arith.constant 0 : index
    %c0_7 = arith.constant 0 : index
    %9 = vector.load %arg4[%c0_6, %c0_7] : memref<256x256xbf16, #tpu.memory_space<vmem>>, vector<256x256xbf16>
    %cst_8 = arith.constant dense<0.000000e+00> : vector<16x256xf32>
    %10 = tpu.matmul %8, %9, %cst_8 {dimension_numbers = #tpu.dot_dimension_numbers<[1], [0], [0], [1], [0, 0, 1, 1], [], []>} : vector<16x256xbf16>, vector<256x256xbf16>, vector<16x256xf32> -> vector<16x256xf32>
    %c0_9 = arith.constant 0 : index
    %c0_10 = arith.constant 0 : index
    %11 = vector.load %arg5[%c0_9, %c0_10] : memref<1x256xf32, #tpu.memory_space<vmem>>, vector<1x256xf32>
    %12 = vector.broadcast %11 : vector<1x256xf32> to vector<16x256xf32>
    %13 = arith.addf %10, %12 : vector<16x256xf32>
    %cst_11 = arith.constant 0.000000e+00 : f32
    %14 = vector.broadcast %cst_11 : f32 to vector<16x256xf32>
    %15 = arith.maximumf %13, %14 : vector<16x256xf32>
    %16 = arith.truncf %15 : vector<16x256xf32> to vector<16x256xbf16>
    %c0_12 = arith.constant 0 : index
    %c0_13 = arith.constant 0 : index
    %17 = vector.load %arg6[%c0_12, %c0_13] : memref<256x128xbf16, #tpu.memory_space<vmem>>, vector<256x128xbf16>
    %cst_14 = arith.constant dense<0.000000e+00> : vector<16x128xf32>
    %18 = tpu.matmul %16, %17, %cst_14 {dimension_numbers = #tpu.dot_dimension_numbers<[1], [0], [0], [1], [0, 0, 1, 1], [], []>} : vector<16x256xbf16>, vector<256x128xbf16>, vector<16x128xf32> -> vector<16x128xf32>
    %c0_15 = arith.constant 0 : index
    %c0_16 = arith.constant 0 : index
    %19 = vector.load %arg7[%c0_15, %c0_16] : memref<1x128xf32, #tpu.memory_space<vmem>>, vector<1x128xf32>
    %20 = vector.broadcast %19 : vector<1x128xf32> to vector<16x128xf32>
    %21 = arith.addf %18, %20 : vector<16x128xf32>
    %c0_17 = arith.constant 0 : index
    %c0_18 = arith.constant 0 : index
    %22 = vector.load %arg8[%c0_17, %c0_18] : memref<16x128xf32, #tpu.memory_space<vmem>>, vector<16x128xf32>
    tpu.vector_store %arg8[%c0_17, %c0_18], %21 {strides = array<i32>} : memref<16x128xf32, #tpu.memory_space<vmem>>, vector<16x128xf32>,
    return
  }
  func.func @transform_0(%arg0: i32) -> (i32, i32) {
    %c0_i32 = arith.constant 0 : i32
    %c0_i32_0 = arith.constant 0 : i32
    return %arg0, %c0_i32 : i32, i32
  }
  func.func @transform_1(%arg0: i32) -> (i32, i32) {
    %c0_i32 = arith.constant 0 : i32
    %c0_i32_0 = arith.constant 0 : i32
    %c0_i32_1 = arith.constant 0 : i32
    return %c0_i32, %c0_i32_0 : i32, i32
  }
  func.func @transform_2(%arg0: i32) -> (i32, i32) {
    %c0_i32 = arith.constant 0 : i32
    %c0_i32_0 = arith.constant 0 : i32
    %c0_i32_1 = arith.constant 0 : i32
    return %c0_i32, %c0_i32_0 : i32, i32
  }
  func.func @transform_3(%arg0: i32) -> (i32, i32) {
    %c0_i32 = arith.constant 0 : i32
    %c0_i32_0 = arith.constant 0 : i32
    %c0_i32_1 = arith.constant 0 : i32
    return %c0_i32, %c0_i32_0 : i32, i32
  }
  func.func @transform_4(%arg0: i32) -> (i32, i32) {
    %c0_i32 = arith.constant 0 : i32
    %c0_i32_0 = arith.constant 0 : i32
    %c0_i32_1 = arith.constant 0 : i32
    return %c0_i32, %c0_i32_0 : i32, i32
  }
  func.func @transform_5(%arg0: i32) -> (i32, i32) {
    %c0_i32 = arith.constant 0 : i32
    %c0_i32_0 = arith.constant 0 : i32
    %c0_i32_1 = arith.constant 0 : i32
    return %c0_i32, %c0_i32_0 : i32, i32
  }
  func.func @transform_6(%arg0: i32) -> (i32, i32) {
    %c0_i32 = arith.constant 0 : i32
    %c0_i32_0 = arith.constant 0 : i32
    %c0_i32_1 = arith.constant 0 : i32
    return %c0_i32, %c0_i32_0 : i32, i32
  }
  func.func @transform_7(%arg0: i32) -> (i32, i32) {
    %c0_i32 = arith.constant 0 : i32
    %c0_i32_0 = arith.constant 0 : i32
    return %arg0, %c0_i32 : i32, i32
  }
}

</mosaic_0001>

<llo_original>
// kernel: mlp_forward.1
$region0: #{mlp_forward.1}
  #allocation0 [shape = 'u32[]', space=smem, size = 0x4, offset = 0x4, fixed_abs, tag = 'smem constant byte address 0x4 - core index']
  #allocation1 [shape = 'u32[72,128]{1,0:T(1,128)}', space=vmem, size = 0x9000, scoped, tag = 'internal scratch']
  %s0 = inlined_call_operand.vmem [shape: bf16[16,128], index: 0, kind: input, shape index: {}]
  %s1 = inlined_call_operand.hbm [shape: bf16[128,256], index: 1, kind: input, shape index: {}]
  %s2 = inlined_call_operand.vmem [shape: f32[1,256], index: 2, kind: input, shape index: {}]
  %s3 = inlined_call_operand.hbm [shape: bf16[256,256], index: 3, kind: input, shape index: {}]
  %s4 = inlined_call_operand.vmem [shape: f32[1,256], index: 4, kind: input, shape index: {}]
  %s5 = inlined_call_operand.hbm [shape: bf16[256,128], index: 5, kind: input, shape index: {}]
  %s6 = inlined_call_operand.vmem [shape: f32[1,128], index: 6, kind: input, shape index: {}]
  %s7 = inlined_call_operand.vmem [shape: f32[16,128], index: 7, kind: output, shape index: {}]
  %s8 = sld [smem:[#allocation0]]
  $region50: #{mlp_forward.1} parent=0
    _
  %s10 = ssub.s32 1, %s8
  %s11 = scalar_select 0, %s10, %s8
  $region1: #{mlp_forward.1} parent=0
    #allocation2 [shape = 'u8[65536]{0}', space=vmem, size = 0x10000, scoped, tag = 'input window, operand 1, single buffered']
    #allocation3 [shape = 's32[1]{0}', space=sflag, size = 0x4, scoped, tag = 'scoped memory for mlp_forward.1']
    #allocation4 [shape = 'u8[131072]{0}', space=vmem, size = 0x20000, scoped, tag = 'input window, operand 3, single buffered']
    #allocation5 [shape = 's32[1]{0}', space=sflag, size = 0x4, scoped, tag = 'scoped memory for mlp_forward.1']
    #allocation6 [shape = 'u8[65536]{0}', space=vmem, size = 0x10000, scoped, tag = 'input window, operand 5, single buffered']
    %12 = vsyncpa [#allocation3], 0
    %13 = vsyncpa [#allocation5], 0
    // Predicated region
    $region2: #{mlp_forward.1} parent=1 // pred_check
      _
    $region3: #{mlp_forward.1} parent=1 // pred_check_branch
      %15 = sbr.rel (0) target = $region5
    $region4: #{mlp_forward.1} parent=1 // pred_region
      _
    $region5: #{mlp_forward.1} parent=1 // pred_fallthru
      _
    // Predicated region
    $region6: #{mlp_forward.1} parent=1 // pred_check
      _
    $region7: #{mlp_forward.1} parent=1 // pred_check_branch
      %17 = sbr.rel (0) target = $region9
    $region8: #{mlp_forward.1} parent=1 // pred_region
      %19 = vsyncadd [#allocation3], 0
      %s20 = sshll.u32 %s1, 4
      %s21 = int_to_ptr.hbm [resolvable:$true] %s20
      %s22 = sshll.u32 [#allocation2], 4
      %s23 = int_to_ptr.vmem [resolvable:$true] %s22
      %28 = dma.hbm_to_vmem [thread:$0]  %s21, 2048, %s23, [#allocation3], 128, 128, 8
    $region9: #{mlp_forward.1} parent=1 // pred_fallthru
      _
    // Predicated region
    $region10: #{mlp_forward.1} parent=1 // pred_check
      _
    $region11: #{mlp_forward.1} parent=1 // pred_check_branch
      %30 = sbr.rel (0) target = $region13
    $region12: #{mlp_forward.1} parent=1 // pred_region
      _
    $region13: #{mlp_forward.1} parent=1 // pred_fallthru
      _
    // Predicated region
    $region14: #{mlp_forward.1} parent=1 // pred_check
      _
    $region15: #{mlp_forward.1} parent=1 // pred_check_branch
      %32 = sbr.rel (0) target = $region17
    $region16: #{mlp_forward.1} parent=1 // pred_region
      %34 = vsyncadd [#allocation5], 0
      %s35 = sshll.u32 %s3, 4
      %s36 = int_to_ptr.hbm [resolvable:$true] %s35
      %s37 = sshll.u32 [#allocation4], 4
      %s38 = int_to_ptr.vmem [resolvable:$true] %s37
      %43 = dma.hbm_to_vmem [thread:$0]  %s36, 4096, %s38, [#allocation5], 128, 128, 8
    $region17: #{mlp_forward.1} parent=1 // pred_fallthru
      _
    // Predicated region
    $region18: #{mlp_forward.1} parent=1 // pred_check
      _
    $region19: #{mlp_forward.1} parent=1 // pred_check_branch
      %45 = sbr.rel (0) target = $region21
    $region20: #{mlp_forward.1} parent=1 // pred_region
      _
    $region21: #{mlp_forward.1} parent=1 // pred_fallthru
      _
    // Predicated region
    $region22: #{mlp_forward.1} parent=1 // pred_check
      _
    $region23: #{mlp_forward.1} parent=1 // pred_check_branch
      %47 = sbr.rel (0) target = $region25
    $region24: #{mlp_forward.1} parent=1 // pred_region
      %49 = vsyncadd [#allocation5], 0
      %s50 = sshll.u32 %s5, 4
      %s51 = int_to_ptr.hbm [resolvable:$true] %s50
      %s52 = sshll.u32 [#allocation6], 4
      %s53 = int_to_ptr.vmem [resolvable:$true] %s52
      %58 = dma.hbm_to_vmem [thread:$0]  %s51, 2048, %s53, [#allocation5], 64, 64, 4
    $region25: #{mlp_forward.1} parent=1 // pred_fallthru
      _
    // Predicated region
    $region26: #{mlp_forward.1} parent=1 // pred_check
      _
    $region27: #{mlp_forward.1} parent=1 // pred_check_branch
      %60 = sbr.rel (0) target = $region29
    $region28: #{mlp_forward.1} parent=1 // pred_region
      _
    $region29: #{mlp_forward.1} parent=1 // pred_fallthru
      _
    // Predicated region
    $region30: #{mlp_forward.1} parent=1 // pred_check
      _
    $region31: #{mlp_forward.1} parent=1 // pred_check_branch
      %62 = sbr.rel (0) target = $region33
    $region32: #{mlp_forward.1} parent=1 // pred_region
      %64 = dma.done [#allocation3], 2048
    $region33: #{mlp_forward.1} parent=1 // pred_fallthru
      _
    // Predicated region
    $region34: #{mlp_forward.1} parent=1 // pred_check
      _
    $region35: #{mlp_forward.1} parent=1 // pred_check_branch
      %66 = sbr.rel (0) target = $region37
    $region36: #{mlp_forward.1} parent=1 // pred_region
      %68 = dma.done [#allocation5], 4096
    $region37: #{mlp_forward.1} parent=1 // pred_fallthru
      _
    // Predicated region
    $region38: #{mlp_forward.1} parent=1 // pred_check
      _
    $region39: #{mlp_forward.1} parent=1 // pred_check_branch
      %70 = sbr.rel (0) target = $region41
    $region40: #{mlp_forward.1} parent=1 // pred_region
      %72 = dma.done [#allocation5], 2048
    $region41: #{mlp_forward.1} parent=1 // pred_fallthru
      _
    %v73 = vld [vmem:[%s0] sm:$0xf]
    %v74 = vld [vmem:[%s0 + $0x4] sm:$0xf]
    %v75 = vld [vmem:[#allocation2] sm:$0xff]
    %v76 = vld [vmem:[#allocation2 + $0x8] sm:$0xff]
    %v77 = vld [vmem:[#allocation2 + $0x10] sm:$0xff]
    %v78 = vld [vmem:[#allocation2 + $0x18] sm:$0xff]
    %v79 = vld [vmem:[#allocation2 + $0x20] sm:$0xff]
    %v80 = vld [vmem:[#allocation2 + $0x28] sm:$0xff]
    %v81 = vld [vmem:[#allocation2 + $0x30] sm:$0xff]
    %v82 = vld [vmem:[#allocation2 + $0x38] sm:$0xff]
    %v83 = vld [vmem:[#allocation2 + $0x40] sm:$0xff]
    %v84 = vld [vmem:[#allocation2 + $0x48] sm:$0xff]
    %v85 = vld [vmem:[#allocation2 + $0x50] sm:$0xff]
    %v86 = vld [vmem:[#allocation2 + $0x58] sm:$0xff]
    %v87 = vld [vmem:[#allocation2 + $0x60] sm:$0xff]
    %v88 = vld [vmem:[#allocation2 + $0x68] sm:$0xff]
    %v89 = vld [vmem:[#allocation2 + $0x70] sm:$0xff]
    %v90 = vld [vmem:[#allocation2 + $0x78] sm:$0xff]
    %v91 = vld [vmem:[%s2] sm:$0x3]
    %v93 = vperm.slane %v91, 0
    %v94 = vperm.slane %v91, 1
    %v99 = vunpack.c.l.b16 %v73
    %v100 = vunpack.c.l.b16 %v74
    %v101 = vpack.c.b16 %v100, %v99
    %v119 = vunpack.c.l.b16 %v75
    %v120 = vunpack.c.h.b16 %v75
    %v121 = vunpack.c.l.b16 %v76
    %v122 = vunpack.c.h.b16 %v76
    %v123 = vunpack.c.l.b16 %v77
    %v124 = vunpack.c.h.b16 %v77
    %v125 = vunpack.c.l.b16 %v78
    %v126 = vunpack.c.h.b16 %v78
    %v127 = vunpack.c.l.b16 %v79
    %v128 = vunpack.c.h.b16 %v79
    %v129 = vunpack.c.l.b16 %v80
    %v130 = vunpack.c.h.b16 %v80
    %v131 = vunpack.c.l.b16 %v81
    %v132 = vunpack.c.h.b16 %v81
    %v133 = vunpack.c.l.b16 %v82
    %v134 = vunpack.c.h.b16 %v82
    %v135 = vunpack.c.l.b16 %v83
    %v136 = vunpack.c.h.b16 %v83
    %v137 = vunpack.c.l.b16 %v84
    %v138 = vunpack.c.h.b16 %v84
    %v139 = vunpack.c.l.b16 %v85
    %v140 = vunpack.c.h.b16 %v85
    %v141 = vunpack.c.l.b16 %v86
    %v142 = vunpack.c.h.b16 %v86
    %v143 = vunpack.c.l.b16 %v87
    %v144 = vunpack.c.h.b16 %v87
    %v145 = vunpack.c.l.b16 %v88
    %v146 = vunpack.c.h.b16 %v88
    %v147 = vunpack.c.l.b16 %v89
    %v148 = vunpack.c.h.b16 %v89
    %v149 = vunpack.c.l.b16 %v90
    %v150 = vunpack.c.h.b16 %v90
    %v151 = vpack.c.b16 %v121, %v119
    %v152 = vpack.c.b16 %v122, %v120
    %v153 = vpack.c.b16 %v125, %v123
    %v154 = vpack.c.b16 %v126, %v124
    %v155 = vpack.c.b16 %v129, %v127
    %v156 = vpack.c.b16 %v130, %v128
    %v157 = vpack.c.b16 %v133, %v131
    %v158 = vpack.c.b16 %v134, %v132
    %v159 = vpack.c.b16 %v137, %v135
    %v160 = vpack.c.b16 %v138, %v136
    %v161 = vpack.c.b16 %v141, %v139
    %v162 = vpack.c.b16 %v142, %v140
    %v163 = vpack.c.b16 %v145, %v143
    %v164 = vpack.c.b16 %v146, %v144
    %v165 = vpack.c.b16 %v149, %v147
    %v166 = vpack.c.b16 %v150, %v148
    %183 = vmatpush.bf16.msra.mxu0 %v165
    %184 = vmatpush.bf16.msra.mxu0 %v163
    %185 = vmatpush.bf16.msra.mxu0 %v161
    %186 = vmatpush.bf16.msra.mxu0 %v159
    %187 = vmatpush.bf16.msra.mxu0 %v157
    %188 = vmatpush.bf16.msra.mxu0 %v155
    %189 = vmatpush.bf16.msra.mxu0 %v153
    %190 = vmatpush.bf16.msra.mxu0 %v151
    %191 = vmatmul.bf16.gmra.mxu0 %v101
    %v192 = vpop.f32.mrf.mxu0
    %v193 = vadd.f32 %v93, %v192
    %v194 = vpop.f32.mrf.mxu0
    %v195 = vadd.f32 %v93, %v194
    %196 = vdwg.mxu0
    %197 = vmatpush.bf16.msra.mxu0 %v166
    %198 = vmatpush.bf16.msra.mxu0 %v164
    %199 = vmatpush.bf16.msra.mxu0 %v162
    %200 = vmatpush.bf16.msra.mxu0 %v160
    %201 = vmatpush.bf16.msra.mxu0 %v158
    %202 = vmatpush.bf16.msra.mxu0 %v156
    %203 = vmatpush.bf16.msra.mxu0 %v154
    %204 = vmatpush.bf16.msra.mxu0 %v152
    %205 = vmatmul.bf16.gmra.mxu0 %v101
    %v206 = vpop.f32.mrf.mxu0
    %v207 = vadd.f32 %v94, %v206
    %v208 = vpop.f32.mrf.mxu0
    %v209 = vadd.f32 %v94, %v208
    %210 = vdwg.mxu0
    %v211 = vmax.f32 %v193, 0.0
    %v212 = vmax.f32 %v207, 0.0
    %v213 = vmax.f32 %v195, 0.0
    %v214 = vmax.f32 %v209, 0.0
    %v215 = vpack.c.bf16 %v213, %v211
    %v216 = vpack.c.bf16 %v214, %v212
    %v217 = vld [vmem:[#allocation4] sm:$0xff]
    %v218 = vld [vmem:[#allocation4 + $0x8] sm:$0xff]
    %v219 = vld [vmem:[#allocation4 + $0x10] sm:$0xff]
    %v220 = vld [vmem:[#allocation4 + $0x18] sm:$0xff]
    %v221 = vld [vmem:[#allocation4 + $0x20] sm:$0xff]
    %v222 = vld [vmem:[#allocation4 + $0x28] sm:$0xff]
    %v223 = vld [vmem:[#allocation4 + $0x30] sm:$0xff]
    %v224 = vld [vmem:[#allocation4 + $0x38] sm:$0xff]
    %v225 = vld [vmem:[#allocation4 + $0x40] sm:$0xff]
    %v226 = vld [vmem:[#allocation4 + $0x48] sm:$0xff]
    %v227 = vld [vmem:[#allocation4 + $0x50] sm:$0xff]
    %v228 = vld [vmem:[#allocation4 + $0x58] sm:$0xff]
    %v229 = vld [vmem:[#allocation4 + $0x60] sm:$0xff]
    %v230 = vld [vmem:[#allocation4 + $0x68] sm:$0xff]
    %v231 = vld [vmem:[#allocation4 + $0x70] sm:$0xff]
    %v232 = vld [vmem:[#allocation4 + $0x78] sm:$0xff]
    %v233 = vld [vmem:[#allocation4 + $0x80] sm:$0xff]
    %v234 = vld [vmem:[#allocation4 + $0x88] sm:$0xff]
    %v235 = vld [vmem:[#allocation4 + $0x90] sm:$0xff]
    %v236 = vld [vmem:[#allocation4 + $0x98] sm:$0xff]
    %v237 = vld [vmem:[#allocation4 + $0xa0] sm:$0xff]
    %v238 = vld [vmem:[#allocation4 + $0xa8] sm:$0xff]
    %v239 = vld [vmem:[#allocation4 + $0xb0] sm:$0xff]
    %v240 = vld [vmem:[#allocation4 + $0xb8] sm:$0xff]
    %v241 = vld [vmem:[#allocation4 + $0xc0] sm:$0xff]
    %v242 = vld [vmem:[#allocation4 + $0xc8] sm:$0xff]
    %v243 = vld [vmem:[#allocation4 + $0xd0] sm:$0xff]
    %v244 = vld [vmem:[#allocation4 + $0xd8] sm:$0xff]
    %v245 = vld [vmem:[#allocation4 + $0xe0] sm:$0xff]
    %v246 = vld [vmem:[#allocation4 + $0xe8] sm:$0xff]
    %v247 = vld [vmem:[#allocation4 + $0xf0] sm:$0xff]
    %v248 = vld [vmem:[#allocation4 + $0xf8] sm:$0xff]
    %v249 = vld [vmem:[%s4] sm:$0x3]
    %v251 = vperm.slane %v249, 0
    %v252 = vperm.slane %v249, 1
    %v287 = vunpack.c.l.b16 %v217
    %v288 = vunpack.c.h.b16 %v217
    %v289 = vunpack.c.l.b16 %v218
    %v290 = vunpack.c.h.b16 %v218
    %v291 = vunpack.c.l.b16 %v219
    %v292 = vunpack.c.h.b16 %v219
    %v293 = vunpack.c.l.b16 %v220
    %v294 = vunpack.c.h.b16 %v220
    %v295 = vunpack.c.l.b16 %v221
    %v296 = vunpack.c.h.b16 %v221
    %v297 = vunpack.c.l.b16 %v222
    %v298 = vunpack.c.h.b16 %v222
    %v299 = vunpack.c.l.b16 %v223
    %v300 = vunpack.c.h.b16 %v223
    %v301 = vunpack.c.l.b16 %v224
    %v302 = vunpack.c.h.b16 %v224
    %v303 = vunpack.c.l.b16 %v225
    %v304 = vunpack.c.h.b16 %v225
    %v305 = vunpack.c.l.b16 %v226
    %v306 = vunpack.c.h.b16 %v226
    %v307 = vunpack.c.l.b16 %v227
    %v308 = vunpack.c.h.b16 %v227
    %v309 = vunpack.c.l.b16 %v228
    %v310 = vunpack.c.h.b16 %v228
    %v311 = vunpack.c.l.b16 %v229
    %v312 = vunpack.c.h.b16 %v229
    %v313 = vunpack.c.l.b16 %v230
    %v314 = vunpack.c.h.b16 %v230
    %v315 = vunpack.c.l.b16 %v231
    %v316 = vunpack.c.h.b16 %v231
    %v317 = vunpack.c.l.b16 %v232
    %v318 = vunpack.c.h.b16 %v232
    %v319 = vunpack.c.l.b16 %v233
    %v320 = vunpack.c.h.b16 %v233
    %v321 = vunpack.c.l.b16 %v234
    %v322 = vunpack.c.h.b16 %v234
    %v323 = vunpack.c.l.b16 %v235
    %v324 = vunpack.c.h.b16 %v235
    %v325 = vunpack.c.l.b16 %v236
    %v326 = vunpack.c.h.b16 %v236
    %v327 = vunpack.c.l.b16 %v237
    %v328 = vunpack.c.h.b16 %v237
    %v329 = vunpack.c.l.b16 %v238
    %v330 = vunpack.c.h.b16 %v238
    %v331 = vunpack.c.l.b16 %v239
    %v332 = vunpack.c.h.b16 %v239
    %v333 = vunpack.c.l.b16 %v240
    %v334 = vunpack.c.h.b16 %v240
    %v335 = vunpack.c.l.b16 %v241
    %v336 = vunpack.c.h.b16 %v241
    %v337 = vunpack.c.l.b16 %v242
    %v338 = vunpack.c.h.b16 %v242
    %v339 = vunpack.c.l.b16 %v243
    %v340 = vunpack.c.h.b16 %v243
    %v341 = vunpack.c.l.b16 %v244
    %v342 = vunpack.c.h.b16 %v244
    %v343 = vunpack.c.l.b16 %v245
    %v344 = vunpack.c.h.b16 %v245
    %v345 = vunpack.c.l.b16 %v246
    %v346 = vunpack.c.h.b16 %v246
    %v347 = vunpack.c.l.b16 %v247
    %v348 = vunpack.c.h.b16 %v247
    %v349 = vunpack.c.l.b16 %v248
    %v350 = vunpack.c.h.b16 %v248
    %v351 = vpack.c.b16 %v289, %v287
    %v352 = vpack.c.b16 %v290, %v288
    %v353 = vpack.c.b16 %v293, %v291
    %v354 = vpack.c.b16 %v294, %v292
    %v355 = vpack.c.b16 %v297, %v295
    %v356 = vpack.c.b16 %v298, %v296
    %v357 = vpack.c.b16 %v301, %v299
    %v358 = vpack.c.b16 %v302, %v300
    %v359 = vpack.c.b16 %v305, %v303
    %v360 = vpack.c.b16 %v306, %v304
    %v361 = vpack.c.b16 %v309, %v307
    %v362 = vpack.c.b16 %v310, %v308
    %v363 = vpack.c.b16 %v313, %v311
    %v364 = vpack.c.b16 %v314, %v312
    %v365 = vpack.c.b16 %v317, %v315
    %v366 = vpack.c.b16 %v318, %v316
    %v367 = vpack.c.b16 %v321, %v319
    %v368 = vpack.c.b16 %v322, %v320
    %v369 = vpack.c.b16 %v325, %v323
    %v370 = vpack.c.b16 %v326, %v324
    %v371 = vpack.c.b16 %v329, %v327
    %v372 = vpack.c.b16 %v330, %v328
    %v373 = vpack.c.b16 %v333, %v331
    %v374 = vpack.c.b16 %v334, %v332
    %v375 = vpack.c.b16 %v337, %v335
    %v376 = vpack.c.b16 %v338, %v336
    %v377 = vpack.c.b16 %v341, %v339
    %v378 = vpack.c.b16 %v342, %v340
    %v379 = vpack.c.b16 %v345, %v343
    %v380 = vpack.c.b16 %v346, %v344
    %v381 = vpack.c.b16 %v349, %v347
    %v382 = vpack.c.b16 %v350, %v348
    %415 = vmatpush.bf16.msra.mxu0 %v365
    %416 = vmatpush.bf16.msra.mxu0 %v363
    %417 = vmatpush.bf16.msra.mxu0 %v361
    %418 = vmatpush.bf16.msra.mxu0 %v359
    %419 = vmatpush.bf16.msra.mxu0 %v357
    %420 = vmatpush.bf16.msra.mxu0 %v355
    %421 = vmatpush.bf16.msra.mxu0 %v353
    %422 = vmatpush.bf16.msra.mxu0 %v351
    %423 = vmatmul.bf16.gmra.mxu0 %v215
    %v424 = vpop.f32.mrf.mxu0
    %v425 = vadd.f32 %v251, %v424
    %v426 = vpop.f32.mrf.mxu0
    %v427 = vadd.f32 %v251, %v426
    %428 = vdwg.mxu0
    %429 = vmatpush.bf16.msra.mxu0 %v381
    %430 = vmatpush.bf16.msra.mxu0 %v379
    %431 = vmatpush.bf16.msra.mxu0 %v377
    %432 = vmatpush.bf16.msra.mxu0 %v375
    %433 = vmatpush.bf16.msra.mxu0 %v373
    %434 = vmatpush.bf16.msra.mxu0 %v371
    %435 = vmatpush.bf16.msra.mxu0 %v369
    %436 = vmatpush.bf16.msra.mxu0 %v367
    %437 = vmatmul.bf16.gmra.mxu0 %v216
    %v438 = vpop.f32.mrf.mxu0
    %v439 = vadd.f32 %v425, %v438
    %v440 = vpop.f32.mrf.mxu0
    %v441 = vadd.f32 %v427, %v440
    %442 = vdwg.mxu0
    %443 = vmatpush.bf16.msra.mxu0 %v366
    %444 = vmatpush.bf16.msra.mxu0 %v364
    %445 = vmatpush.bf16.msra.mxu0 %v362
    %446 = vmatpush.bf16.msra.mxu0 %v360
    %447 = vmatpush.bf16.msra.mxu0 %v358
    %448 = vmatpush.bf16.msra.mxu0 %v356
    %449 = vmatpush.bf16.msra.mxu0 %v354
    %450 = vmatpush.bf16.msra.mxu0 %v352
    %451 = vmatmul.bf16.gmra.mxu0 %v215
    %v452 = vpop.f32.mrf.mxu0
    %v453 = vadd.f32 %v252, %v452
    %v454 = vpop.f32.mrf.mxu0
    %v455 = vadd.f32 %v252, %v454
    %456 = vdwg.mxu0
    %457 = vmatpush.bf16.msra.mxu0 %v382
    %458 = vmatpush.bf16.msra.mxu0 %v380
    %459 = vmatpush.bf16.msra.mxu0 %v378
    %460 = vmatpush.bf16.msra.mxu0 %v376
    %461 = vmatpush.bf16.msra.mxu0 %v374
    %462 = vmatpush.bf16.msra.mxu0 %v372
    %463 = vmatpush.bf16.msra.mxu0 %v370
    %464 = vmatpush.bf16.msra.mxu0 %v368
    %465 = vmatmul.bf16.gmra.mxu0 %v216
    %v466 = vpop.f32.mrf.mxu0
    %v467 = vadd.f32 %v453, %v466
    %v468 = vpop.f32.mrf.mxu0
    %v469 = vadd.f32 %v455, %v468
    %470 = vdwg.mxu0
    %v471 = vmax.f32 %v439, 0.0
    %v472 = vmax.f32 %v467, 0.0
    %v473 = vmax.f32 %v441, 0.0
    %v474 = vmax.f32 %v469, 0.0
    %v475 = vpack.c.bf16 %v473, %v471
    %v476 = vpack.c.bf16 %v474, %v472
    %v477 = vld [vmem:[#allocation6] sm:$0xf]
    %v478 = vld [vmem:[#allocation6 + $0x4] sm:$0xf]
    %v479 = vld [vmem:[#allocation6 + $0x8] sm:$0xf]
    %v480 = vld [vmem:[#allocation6 + $0xc] sm:$0xf]
    %v481 = vld [vmem:[#allocation6 + $0x10] sm:$0xf]
    %v482 = vld [vmem:[#allocation6 + $0x14] sm:$0xf]
    %v483 = vld [vmem:[#allocation6 + $0x18] sm:$0xf]
    %v484 = vld [vmem:[#allocation6 + $0x1c] sm:$0xf]
    %v485 = vld [vmem:[#allocation6 + $0x20] sm:$0xf]
    %v486 = vld [vmem:[#allocation6 + $0x24] sm:$0xf]
    %v487 = vld [vmem:[#allocation6 + $0x28] sm:$0xf]
    %v488 = vld [vmem:[#allocation6 + $0x2c] sm:$0xf]
    %v489 = vld [vmem:[#allocation6 + $0x30] sm:$0xf]
    %v490 = vld [vmem:[#allocation6 + $0x34] sm:$0xf]
    %v491 = vld [vmem:[#allocation6 + $0x38] sm:$0xf]
    %v492 = vld [vmem:[#allocation6 + $0x3c] sm:$0xf]
    %v493 = vld [vmem:[#allocation6 + $0x40] sm:$0xf]
    %v494 = vld [vmem:[#allocation6 + $0x44] sm:$0xf]
    %v495 = vld [vmem:[#allocation6 + $0x48] sm:$0xf]
    %v496 = vld [vmem:[#allocation6 + $0x4c] sm:$0xf]
    %v497 = vld [vmem:[#allocation6 + $0x50] sm:$0xf]
    %v498 = vld [vmem:[#allocation6 + $0x54] sm:$0xf]
    %v499 = vld [vmem:[#allocation6 + $0x58] sm:$0xf]
    %v500 = vld [vmem:[#allocation6 + $0x5c] sm:$0xf]
    %v501 = vld [vmem:[#allocation6 + $0x60] sm:$0xf]
    %v502 = vld [vmem:[#allocation6 + $0x64] sm:$0xf]
    %v503 = vld [vmem:[#allocation6 + $0x68] sm:$0xf]
    %v504 = vld [vmem:[#allocation6 + $0x6c] sm:$0xf]
    %v505 = vld [vmem:[#allocation6 + $0x70] sm:$0xf]
    %v506 = vld [vmem:[#allocation6 + $0x74] sm:$0xf]
    %v507 = vld [vmem:[#allocation6 + $0x78] sm:$0xf]
    %v508 = vld [vmem:[#allocation6 + $0x7c] sm:$0xf]
    %v509 = vld [vmem:[%s6] sm:$0x1]
    %v511 = vperm.slane %v509, 0
    %v545 = vunpack.c.l.b16 %v477
    %v546 = vunpack.c.l.b16 %v478
    %v547 = vunpack.c.l.b16 %v479
    %v548 = vunpack.c.l.b16 %v480
    %v549 = vunpack.c.l.b16 %v481
    %v550 = vunpack.c.l.b16 %v482
    %v551 = vunpack.c.l.b16 %v483
    %v552 = vunpack.c.l.b16 %v484
    %v553 = vunpack.c.l.b16 %v485
    %v554 = vunpack.c.l.b16 %v486
    %v555 = vunpack.c.l.b16 %v487
    %v556 = vunpack.c.l.b16 %v488
    %v557 = vunpack.c.l.b16 %v489
    %v558 = vunpack.c.l.b16 %v490
    %v559 = vunpack.c.l.b16 %v491
    %v560 = vunpack.c.l.b16 %v492
    %v561 = vunpack.c.l.b16 %v493
    %v562 = vunpack.c.l.b16 %v494
    %v563 = vunpack.c.l.b16 %v495
    %v564 = vunpack.c.l.b16 %v496
    %v565 = vunpack.c.l.b16 %v497
    %v566 = vunpack.c.l.b16 %v498
    %v567 = vunpack.c.l.b16 %v499
    %v568 = vunpack.c.l.b16 %v500
    %v569 = vunpack.c.l.b16 %v501
    %v570 = vunpack.c.l.b16 %v502
    %v571 = vunpack.c.l.b16 %v503
    %v572 = vunpack.c.l.b16 %v504
    %v573 = vunpack.c.l.b16 %v505
    %v574 = vunpack.c.l.b16 %v506
    %v575 = vunpack.c.l.b16 %v507
    %v576 = vunpack.c.l.b16 %v508
    %v577 = vpack.c.b16 %v546, %v545
    %v578 = vpack.c.b16 %v548, %v547
    %v579 = vpack.c.b16 %v550, %v549
    %v580 = vpack.c.b16 %v552, %v551
    %v581 = vpack.c.b16 %v554, %v553
    %v582 = vpack.c.b16 %v556, %v555
    %v583 = vpack.c.b16 %v558, %v557
    %v584 = vpack.c.b16 %v560, %v559
    %v585 = vpack.c.b16 %v562, %v561
    %v586 = vpack.c.b16 %v564, %v563
    %v587 = vpack.c.b16 %v566, %v565
    %v588 = vpack.c.b16 %v568, %v567
    %v589 = vpack.c.b16 %v570, %v569
    %v590 = vpack.c.b16 %v572, %v571
    %v591 = vpack.c.b16 %v574, %v573
    %v592 = vpack.c.b16 %v576, %v575
    %609 = vmatpush.bf16.msra.mxu0 %v584
    %610 = vmatpush.bf16.msra.mxu0 %v583
    %611 = vmatpush.bf16.msra.mxu0 %v582
    %612 = vmatpush.bf16.msra.mxu0 %v581
    %613 = vmatpush.bf16.msra.mxu0 %v580
    %614 = vmatpush.bf16.msra.mxu0 %v579
    %615 = vmatpush.bf16.msra.mxu0 %v578
    %616 = vmatpush.bf16.msra.mxu0 %v577
    %617 = vmatmul.bf16.gmra.mxu0 %v475
    %v618 = vpop.f32.mrf.mxu0
    %v619 = vadd.f32 %v511, %v618
    %v620 = vpop.f32.mrf.mxu0
    %v621 = vadd.f32 %v511, %v620
    %622 = vdwg.mxu0
    %623 = vmatpush.bf16.msra.mxu0 %v592
    %624 = vmatpush.bf16.msra.mxu0 %v591
    %625 = vmatpush.bf16.msra.mxu0 %v590
    %626 = vmatpush.bf16.msra.mxu0 %v589
    %627 = vmatpush.bf16.msra.mxu0 %v588
    %628 = vmatpush.bf16.msra.mxu0 %v587
    %629 = vmatpush.bf16.msra.mxu0 %v586
    %630 = vmatpush.bf16.msra.mxu0 %v585
    %631 = vmatmul.bf16.gmra.mxu0 %v476
    %v632 = vpop.f32.mrf.mxu0
    %v633 = vadd.f32 %v619, %v632
    %v634 = vpop.f32.mrf.mxu0
    %v635 = vadd.f32 %v621, %v634
    %636 = vdwg.mxu0
    %637 = vst [vmem:[%s7] sm:$0xff] %v633
    %638 = vst [vmem:[%s7 + $0x8] sm:$0xff] %v635
    // Predicated region
    $region42: #{mlp_forward.1} parent=1 // pred_check
      _
    $region43: #{mlp_forward.1} parent=1 // pred_check_branch
      %640 = sbr.rel (0) target = $region45
    $region44: #{mlp_forward.1} parent=1 // pred_region
      _
    $region45: #{mlp_forward.1} parent=1 // pred_fallthru
      _
    // Predicated region
    $region46: #{mlp_forward.1} parent=1 // pred_check
      _
    $region47: #{mlp_forward.1} parent=1 // pred_check_branch
      %642 = sbr.rel (0) target = $region49
    $region48: #{mlp_forward.1} parent=1 // pred_region
      _
    $region49: #{mlp_forward.1} parent=1 // pred_fallthru
      _
    %643 = vsyncpa [#allocation3], 1
    %644 = vsyncpa [#allocation5], 1

</llo_original>
